<compile_context>
chip_gen: v5e
topology: v5e:2x2
jax: 0.10.0
libtpu: 0.0.40
codegen_flags: <defaults>
</compile_context>

<pallas_src>
import functools
import math

import jax
import jax.numpy as jnp
from jax import lax
from jax.experimental import pallas as pl
from jax.experimental.pallas import tpu as pltpu

_NEG_BIG = -1e30  # "minus infinity" that stays finite under f32 arithmetic


def _pick_tile(n, step, target):
    """Largest multiple of `step` that divides `n` and is <= target, else None."""
    best = None
    d = step
    while d <= min(n, target):
        if n % d == 0:
            best = d
        d += step
    return best


def _compiler_params():
    return pltpu.CompilerParams(
        dimension_semantics=("arbitrary",),        # single grid axis is a reduction
        vmem_limit_bytes=32 * 1024 * 1024,          # safe on v5e/v6e/v7x scoped limits
    )


# ---------------------------------------------------------------------------
# mask branch: streaming online log-softmax over the contrast dimension N
# ---------------------------------------------------------------------------
def _supcon_mask_kernel(anchor_ref, contrast_ref, mask_ref, out_ref,
                        m_ref, l_ref, s_ref, cnt_ref, *,
                        temperature, base_temperature):
    t = pl.program_id(0)
    B, TN = mask_ref.shape

    @pl.when(t == 0)
    def _init():
        m_ref[...] = jnp.full_like(m_ref, _NEG_BIG)
        l_ref[...] = jnp.zeros_like(l_ref)
        s_ref[...] = jnp.zeros_like(s_ref)
        cnt_ref[...] = jnp.zeros_like(cnt_ref)

    # Fold 1/T into the small [B, C] anchor tile (keeps bf16 operands bf16 for the MXU).
    fa = anchor_ref[...] * (1.0 / temperature)
    adc = lax.dot_general(fa, contrast_ref[...], (((1,), (1,)), ((), ())),
                          preferred_element_type=jnp.float32)          # [B, TN] f32

    # Self-contrast diagonal: anchor i <-> feature row i (only tiles covering cols < B hit it).
    col = lax.broadcasted_iota(jnp.int32, (B, TN), 1) + t * TN
    row = lax.broadcasted_iota(jnp.int32, (B, TN), 0)
    is_diag = col == row

    msk = jnp.where(is_diag, 0.0, mask_ref[...])                       # mask * logits_mask

    # Running max over the UNMASKED logits (matches torch.max over anchor_dot_contrast).
    m_old = m_ref[...]
    m_new = jnp.maximum(m_old, jnp.max(adc, axis=1, keepdims=True))
    alpha = jnp.exp(m_old - m_new)

    adc_masked = jnp.where(is_diag, _NEG_BIG, adc)                     # exp -> 0 on the diagonal
    l_ref[...] = alpha * l_ref[...] + jnp.sum(jnp.exp(adc_masked - m_new),
                                              axis=1, keepdims=True)
    s_ref[...] += jnp.sum(msk * adc, axis=1, keepdims=True)            # sum(mask * raw logits)
    cnt_ref[...] += jnp.sum(msk, axis=1, keepdims=True)
    m_ref[...] = m_new

    @pl.when(t == pl.num_programs(0) - 1)
    def _finalize():
        m = m_ref[...]
        l = l_ref[...]
        s = s_ref[...]
        cnt = cnt_ref[...]
        log_denom = jnp.log(l + 1e-12)
        # sum(mask*log_prob) = sum(mask*adc) - cnt*(rowmax + log(denom))
        # NOTE: cnt == 0 (anchor with no positives) gives NaN, same as the PyTorch reference.
        mean_log_prob_pos = (s - cnt * (m + log_denom)) / cnt          # [B, 1]
        loss_col = -(temperature / base_temperature) * mean_log_prob_pos
        mean = jnp.sum(loss_col, axis=0, keepdims=True) * (1.0 / B)    # (1, 1) batch mean
        out_ref[...] = jnp.broadcast_to(mean, out_ref.shape)           # lane-dense single store


def supcon_loss_mask(features, mask, batch_size,
                     temperature=0.07, base_temperature=0.07,
                     tile_n_target=512):
    N, C = features.shape
    B = int(batch_size)
    assert mask.shape == (B, N), (mask.shape, (B, N))
    mask = jnp.asarray(mask, jnp.float32)

    # Contrast tile: last dim of the mask block must be a multiple of 128 (or == N).
    tn = _pick_tile(N, 128, tile_n_target) or N
    grid = (N // tn,)

    # Anchors are rows [0, B) of features: address them via the index_map when B is
    # sublane-aligned, otherwise fall back to a wrapper slice.
    anchor_arg = features if B % 8 == 0 else features[:B]
    anchor_spec = pl.BlockSpec((B, C), lambda t: (0, 0))
    contrast_spec = pl.BlockSpec((tn, C), lambda t: (t, 0))
    mask_spec = pl.BlockSpec((B, tn), lambda t: (0, t))

    out = pl.pallas_call(
        functools.partial(_supcon_mask_kernel,
                          temperature=temperature,
                          base_temperature=base_temperature),
        out_shape=jax.ShapeDtypeStruct((8, 128), jnp.float32),
        grid=grid,
        in_specs=[anchor_spec, contrast_spec, mask_spec],
        out_specs=pl.BlockSpec((8, 128), lambda t: (0, 0)),
        scratch_shapes=[pltpu.VMEM((B, 1), jnp.float32)] * 4,  # m, l, s, cnt
        compiler_params=_compiler_params(),
    )(anchor_arg, features, mask)
    return out[0, 0]


# ---------------------------------------------------------------------------
# no-mask branch: MoCo-style InfoNCE (label 0), streaming over the queue
# ---------------------------------------------------------------------------
def _supcon_nomask_kernel(q_ref, k_ref, queue_ref, out_ref,
                          m_ref, l_ref, lpos_ref, *, temperature):
    t = pl.program_id(0)
    q = q_ref[...] * (1.0 / temperature)                               # fold 1/T into [B, C]

    @pl.when(t == 0)
    def _init():
        # Positive logit (q.k)/T seeds the online logsumexp: m = l_pos, l = exp(l_pos - m) = 1.
        lpos = jnp.sum(q.astype(jnp.float32) * k_ref[...].astype(jnp.float32),
                       axis=1, keepdims=True)                          # [B, 1]
        lpos_ref[...] = lpos
        m_ref[...] = lpos
        l_ref[...] = jnp.ones_like(l_ref)

    l_neg = lax.dot_general(q, queue_ref[...], (((1,), (1,)), ((), ())),
                            preferred_element_type=jnp.float32)        # [B, TK] f32
    m_old = m_ref[...]
    m_new = jnp.maximum(m_old, jnp.max(l_neg, axis=1, keepdims=True))
    alpha = jnp.exp(m_old - m_new)
    l_ref[...] = alpha * l_ref[...] + jnp.sum(jnp.exp(l_neg - m_new),
                                              axis=1, keepdims=True)
    m_ref[...] = m_new

    @pl.when(t == pl.num_programs(0) - 1)
    def _finalize():
        B = lpos_ref.shape[0]
        lse = m_ref[...] + jnp.log(l_ref[...])
        loss_col = lse - lpos_ref[...]                                 # CE vs label 0, per sample
        mean = jnp.sum(loss_col, axis=0, keepdims=True) * (1.0 / B)
        out_ref[...] = jnp.broadcast_to(mean, out_ref.shape)


def supcon_loss_nomask(features, batch_size, temperature=0.07, tile_k_target=512):
    N, C = features.shape
    B = int(batch_size)
    K = N - 2 * B
    assert K > 0, "no-mask branch needs a non-empty queue"

    # Queue tiles are read straight out of `features` (rows [2B, N)) when the tile size
    # divides both 2B (so the start offset lands on a block boundary) and K.
    tk = _pick_tile(math.gcd(2 * B, K), 8, tile_k_target) if B % 8 == 0 else None
    if tk is not None:
        q_arg, k_arg, queue_arg = features, features, features
        q_spec = pl.BlockSpec((B, C), lambda t: (0, 0))
        k_spec = pl.BlockSpec((B, C), lambda t: (1, 0))
        off = (2 * B) // tk
        queue_spec = pl.BlockSpec((tk, C), lambda t, _o=off: (_o + t, 0))
    else:
        # Fallback: explicit slices (extra HBM copies) when the shapes don't tile cleanly.
        q_arg, k_arg, queue_arg = features[:B], features[B:2 * B], features[2 * B:]
        q_spec = pl.BlockSpec((B, C), lambda t: (0, 0))
        k_spec = pl.BlockSpec((B, C), lambda t: (0, 0))
        tk = _pick_tile(K, 8, tile_k_target) or K
        queue_spec = pl.BlockSpec((tk, C), lambda t: (t, 0))

    out = pl.pallas_call(
        functools.partial(_supcon_nomask_kernel, temperature=temperature),
        out_shape=jax.ShapeDtypeStruct((8, 128), jnp.float32),
        grid=(K // tk,),
        in_specs=[q_spec, k_spec, queue_spec],
        out_specs=pl.BlockSpec((8, 128), lambda t: (0, 0)),
        scratch_shapes=[pltpu.VMEM((B, 1), jnp.float32)] * 3,  # m, l, l_pos
        compiler_params=_compiler_params(),
    )(q_arg, k_arg, queue_arg)
    return out[0, 0]


# ---------------------------------------------------------------------------
# pure-JAX references (mirror the PyTorch code line by line)
# ---------------------------------------------------------------------------
def _ref_mask(features, mask, B, T=0.07, bT=0.07):
    adc = (features[:B] @ features.T) / T
    logits = adc - jnp.max(adc, axis=1, keepdims=True)
    N = features.shape[0]
    idx = jnp.arange(B)
    logits_mask = jnp.ones((B, N), jnp.float32).at[idx, idx].set(0.0)
    m = mask.astype(jnp.float32) * logits_mask
    exp_logits = jnp.exp(logits) * logits_mask
    log_prob = logits - jnp.log(exp_logits.sum(1, keepdims=True) + 1e-12)
    mlpp = (m * log_prob).sum(1) / m.sum(1)
    return jnp.mean(-(T / bT) * mlpp)


def _ref_nomask(features, B, T=0.07):
    q, k, queue = features[:B], features[B:2 * B], features[2 * B:]
    l_pos = jnp.sum(q * k, axis=1, keepdims=True)
    l_neg = q @ queue.T
    logits = jnp.concatenate([l_pos, l_neg], axis=1) / T
    lse = jax.scipy.special.logsumexp(logits, axis=1)
    return jnp.mean(lse - logits[:, 0])


# ---------------------------------------------------------------------------
if __name__ == "__main__":
    key = jax.random.PRNGKey(0)
    B, C = 8, 128
    K = 368                       # queue size
    N = 2 * B + K                 # 384 rows total: q | k | queue

    features = jax.random.normal(key, (N, C), dtype=jnp.float32)
    features = features / jnp.linalg.norm(features, axis=1, keepdims=True)

    # mask branch: pseudo-label equality mask, shape [B, N]
    labels = jnp.arange(N) % 3
    mask = (labels[:B, None] == labels[None, :]).astype(jnp.float32)

    # small tile targets so the test exercises the multi-tile streaming path
    loss_mask = jax.block_until_ready(
        supcon_loss_mask(features, mask, B, tile_n_target=128))       # 3 contrast tiles
    loss_nomask = jax.block_until_ready(
        supcon_loss_nomask(features, B, tile_k_target=64))            # 23 queue tiles

    ref_m = _ref_mask(features, mask, B)
    ref_n = _ref_nomask(features, B)

    assert jnp.allclose(loss_mask, ref_m, rtol=1e-4, atol=1e-4), (loss_mask, ref_m)
    assert jnp.allclose(loss_nomask, ref_n, rtol=1e-4, atol=1e-4), (loss_nomask, ref_n)

    print("KERNEL_OK")
</pallas_src>

<mosaic_0001>
module attributes {stable_mosaic.version = 11 : i64} {
  func.func @_supcon_mask_kernel(%arg0: i32, %arg1: memref<8x128xf32, #tpu.memory_space<vmem>>, %arg2: memref<128x128xf32, #tpu.memory_space<vmem>>, %arg3: memref<8x128xf32, #tpu.memory_space<vmem>>, %arg4: memref<8x128xf32, #tpu.memory_space<vmem>>, %arg5: memref<8x1xf32, #tpu.memory_space<vmem>>, %arg6: memref<8x1xf32, #tpu.memory_space<vmem>>, %arg7: memref<8x1xf32, #tpu.memory_space<vmem>>, %arg8: memref<8x1xf32, #tpu.memory_space<vmem>>) attributes {dimension_semantics = [#tpu.dimension_semantics<arbitrary>], iteration_bounds = array<i64: 3>, scalar_prefetch = 0 : i64, scratch_operands = 4 : i64, tpu.core_type = #tpu.core_type<tc>, window_params = [{transform_indices = @transform_0, window_bounds = array<i64: 8, 128>}, {transform_indices = @transform_1, window_bounds = array<i64: 128, 128>}, {transform_indices = @transform_2, window_bounds = array<i64: 8, 128>}, {pipeline_mode = #tpu.pipeline_mode<synchronous>, transform_indices = @transform_3, window_bounds = array<i64: 8, 128>}]} {
    %c0_i32 = arith.constant 0 : i32
    %0 = arith.cmpi eq, %arg0, %c0_i32 : i32
    %1 = arith.extui %0 : i1 to i32
    %c0_i32_0 = arith.constant 0 : i32
    %2 = arith.cmpi ne, %1, %c0_i32_0 : i32
    scf.if %2 {
      %cst_30 = arith.constant -1.000000e+30 : f32
      %49 = vector.broadcast %cst_30 : f32 to vector<8x1xf32>
      %c0_31 = arith.constant 0 : index
      %c0_32 = arith.constant 0 : index
      %50 = vector.load %arg5[%c0_31, %c0_32] : memref<8x1xf32, #tpu.memory_space<vmem>>, vector<8x1xf32>
      tpu.vector_store %arg5[%c0_31, %c0_32], %49 {strides = array<i32>} : memref<8x1xf32, #tpu.memory_space<vmem>>, vector<8x1xf32>,
      %cst_33 = arith.constant 0.000000e+00 : f32
      %51 = vector.broadcast %cst_33 : f32 to vector<8x1xf32>
      %c0_34 = arith.constant 0 : index
      %c0_35 = arith.constant 0 : index
      %52 = vector.load %arg6[%c0_34, %c0_35] : memref<8x1xf32, #tpu.memory_space<vmem>>, vector<8x1xf32>
      tpu.vector_store %arg6[%c0_34, %c0_35], %51 {strides = array<i32>} : memref<8x1xf32, #tpu.memory_space<vmem>>, vector<8x1xf32>,
      %cst_36 = arith.constant 0.000000e+00 : f32
      %53 = vector.broadcast %cst_36 : f32 to vector<8x1xf32>
      %c0_37 = arith.constant 0 : index
      %c0_38 = arith.constant 0 : index
      %54 = vector.load %arg7[%c0_37, %c0_38] : memref<8x1xf32, #tpu.memory_space<vmem>>, vector<8x1xf32>
      tpu.vector_store %arg7[%c0_37, %c0_38], %53 {strides = array<i32>} : memref<8x1xf32, #tpu.memory_space<vmem>>, vector<8x1xf32>,
      %cst_39 = arith.constant 0.000000e+00 : f32
      %55 = vector.broadcast %cst_39 : f32 to vector<8x1xf32>
      %c0_40 = arith.constant 0 : index
      %c0_41 = arith.constant 0 : index
      %56 = vector.load %arg8[%c0_40, %c0_41] : memref<8x1xf32, #tpu.memory_space<vmem>>, vector<8x1xf32>
      tpu.vector_store %arg8[%c0_40, %c0_41], %55 {strides = array<i32>} : memref<8x1xf32, #tpu.memory_space<vmem>>, vector<8x1xf32>,
    } else {
    }
    %c0 = arith.constant 0 : index
    %c0_1 = arith.constant 0 : index
    %3 = vector.load %arg1[%c0, %c0_1] : memref<8x128xf32, #tpu.memory_space<vmem>>, vector<8x128xf32>
    %cst = arith.constant 14.2857141 : f32
    %4 = vector.broadcast %cst : f32 to vector<8x128xf32>
    %5 = arith.mulf %3, %4 : vector<8x128xf32>
    %c0_2 = arith.constant 0 : index
    %c0_3 = arith.constant 0 : index
    %6 = vector.load %arg2[%c0_2, %c0_3] : memref<128x128xf32, #tpu.memory_space<vmem>>, vector<128x128xf32>
    %cst_4 = arith.constant dense<0.000000e+00> : vector<8x128xf32>
    %7 = tpu.matmul %5, %6, %cst_4 {dimension_numbers = #tpu.dot_dimension_numbers<[1], [1], [0], [0], [0, 0, 1, 0], [], []>} : vector<8x128xf32>, vector<128x128xf32>, vector<8x128xf32> -> vector<8x128xf32>
    %8 = tpu.iota {dimensions = array<i32: 1>} : vector<8x128xi32>
    %c128_i32 = arith.constant 128 : i32
    %9 = arith.muli %arg0, %c128_i32 : i32
    %10 = vector.broadcast %9 : i32 to vector<8x128xi32>
    %11 = arith.addi %8, %10 : vector<8x128xi32>
    %12 = tpu.iota {dimensions = array<i32: 0>} : vector<8x128xi32>
    %13 = arith.cmpi eq, %11, %12 : vector<8x128xi32>
    %c0_5 = arith.constant 0 : index
    %c0_6 = arith.constant 0 : index
    %14 = vector.load %arg3[%c0_5, %c0_6] : memref<8x128xf32, #tpu.memory_space<vmem>>, vector<8x128xf32>
    %cst_7 = arith.constant 0.000000e+00 : f32
    %15 = vector.broadcast %cst_7 : f32 to vector<8x128xf32>
    %16 = arith.select %13, %15, %14 : vector<8x128xi1>, vector<8x128xf32>
    %c0_8 = arith.constant 0 : index
    %c0_9 = arith.constant 0 : index
    %17 = vector.load %arg5[%c0_8, %c0_9] : memref<8x1xf32, #tpu.memory_space<vmem>>, vector<8x1xf32>
    %cst_10 = arith.constant dense<0xFF800000> : vector<8xf32>
    %18 = vector.multi_reduction <maximumf>, %7, %cst_10 [1] : vector<8x128xf32> to vector<8xf32>
    %19 = vector.shape_cast %18 : vector<8xf32> to vector<8x1xf32>
    %20 = arith.maximumf %17, %19 : vector<8x1xf32>
    %21 = arith.subf %17, %20 : vector<8x1xf32>
    %22 = math.exp %21 : vector<8x1xf32>
    %cst_11 = arith.constant -1.000000e+30 : f32
    %23 = vector.broadcast %cst_11 : f32 to vector<8x128xf32>
    %24 = arith.select %13, %23, %7 : vector<8x128xi1>, vector<8x128xf32>
    %c0_12 = arith.constant 0 : index
    %c0_13 = arith.constant 0 : index
    %25 = vector.load %arg6[%c0_12, %c0_13] : memref<8x1xf32, #tpu.memory_space<vmem>>, vector<8x1xf32>
    %26 = arith.mulf %22, %25 : vector<8x1xf32>
    %27 = vector.broadcast %20 : vector<8x1xf32> to vector<8x128xf32>
    %28 = arith.subf %24, %27 : vector<8x128xf32>
    %29 = math.exp %28 : vector<8x128xf32>
    %cst_14 = arith.constant dense<0.000000e+00> : vector<8xf32>
    %30 = vector.multi_reduction <add>, %29, %cst_14 [1] : vector<8x128xf32> to vector<8xf32>
    %31 = vector.shape_cast %30 : vector<8xf32> to vector<8x1xf32>
    %32 = arith.addf %26, %31 : vector<8x1xf32>
    %c0_15 = arith.constant 0 : index
    %c0_16 = arith.constant 0 : index
    %33 = vector.load %arg6[%c0_15, %c0_16] : memref<8x1xf32, #tpu.memory_space<vmem>>, vector<8x1xf32>
    tpu.vector_store %arg6[%c0_15, %c0_16], %32 {strides = array<i32>} : memref<8x1xf32, #tpu.memory_space<vmem>>, vector<8x1xf32>,
    %c0_17 = arith.constant 0 : index
    %c0_18 = arith.constant 0 : index
    %34 = vector.load %arg7[%c0_17, %c0_18] : memref<8x1xf32, #tpu.memory_space<vmem>>, vector<8x1xf32>
    %35 = arith.mulf %16, %7 : vector<8x128xf32>
    %cst_19 = arith.constant dense<0.000000e+00> : vector<8xf32>
    %36 = vector.multi_reduction <add>, %35, %cst_19 [1] : vector<8x128xf32> to vector<8xf32>
    %37 = vector.shape_cast %36 : vector<8xf32> to vector<8x1xf32>
    %38 = arith.addf %34, %37 : vector<8x1xf32>
    %c0_20 = arith.constant 0 : index
    %c0_21 = arith.constant 0 : index
    %39 = vector.load %arg7[%c0_20, %c0_21] : memref<8x1xf32, #tpu.memory_space<vmem>>, vector<8x1xf32>
    tpu.vector_store %arg7[%c0_20, %c0_21], %38 {strides = array<i32>} : memref<8x1xf32, #tpu.memory_space<vmem>>, vector<8x1xf32>,
    %c0_22 = arith.constant 0 : index
    %c0_23 = arith.constant 0 : index
    %40 = vector.load %arg8[%c0_22, %c0_23] : memref<8x1xf32, #tpu.memory_space<vmem>>, vector<8x1xf32>
    %cst_24 = arith.constant dense<0.000000e+00> : vector<8xf32>
    %41 = vector.multi_reduction <add>, %16, %cst_24 [1] : vector<8x128xf32> to vector<8xf32>
    %42 = vector.shape_cast %41 : vector<8xf32> to vector<8x1xf32>
    %43 = arith.addf %40, %42 : vector<8x1xf32>
    %c0_25 = arith.constant 0 : index
    %c0_26 = arith.constant 0 : index
    %44 = vector.load %arg8[%c0_25, %c0_26] : memref<8x1xf32, #tpu.memory_space<vmem>>, vector<8x1xf32>
    tpu.vector_store %arg8[%c0_25, %c0_26], %43 {strides = array<i32>} : memref<8x1xf32, #tpu.memory_space<vmem>>, vector<8x1xf32>,
    %c0_27 = arith.constant 0 : index
    %c0_28 = arith.constant 0 : index
    %45 = vector.load %arg5[%c0_27, %c0_28] : memref<8x1xf32, #tpu.memory_space<vmem>>, vector<8x1xf32>
    tpu.vector_store %arg5[%c0_27, %c0_28], %20 {strides = array<i32>} : memref<8x1xf32, #tpu.memory_space<vmem>>, vector<8x1xf32>,
    %c2_i32 = arith.constant 2 : i32
    %46 = arith.cmpi eq, %arg0, %c2_i32 : i32
    %47 = arith.extui %46 : i1 to i32
    %c0_i32_29 = arith.constant 0 : i32
    %48 = arith.cmpi ne, %47, %c0_i32_29 : i32
    scf.if %48 {
      %c0_30 = arith.constant 0 : index
      %c0_31 = arith.constant 0 : index
      %49 = vector.load %arg5[%c0_30, %c0_31] : memref<8x1xf32, #tpu.memory_space<vmem>>, vector<8x1xf32>
      %c0_32 = arith.constant 0 : index
      %c0_33 = arith.constant 0 : index
      %50 = vector.load %arg6[%c0_32, %c0_33] : memref<8x1xf32, #tpu.memory_space<vmem>>, vector<8x1xf32>
      %c0_34 = arith.constant 0 : index
      %c0_35 = arith.constant 0 : index
      %51 = vector.load %arg7[%c0_34, %c0_35] : memref<8x1xf32, #tpu.memory_space<vmem>>, vector<8x1xf32>
      %c0_36 = arith.constant 0 : index
      %c0_37 = arith.constant 0 : index
      %52 = vector.load %arg8[%c0_36, %c0_37] : memref<8x1xf32, #tpu.memory_space<vmem>>, vector<8x1xf32>
      %cst_38 = arith.constant 9.99999996E-13 : f32
      %53 = vector.broadcast %cst_38 : f32 to vector<8x1xf32>
      %54 = arith.addf %50, %53 : vector<8x1xf32>
      %55 = math.log %54 : vector<8x1xf32>
      %56 = arith.addf %49, %55 : vector<8x1xf32>
      %57 = arith.mulf %52, %56 : vector<8x1xf32>
      %58 = arith.subf %51, %57 : vector<8x1xf32>
      %59 = arith.divf %58, %52 : vector<8x1xf32>
      %cst_39 = arith.constant -1.000000e+00 : f32
      %60 = vector.broadcast %cst_39 : f32 to vector<8x1xf32>
      %61 = arith.mulf %60, %59 : vector<8x1xf32>
      %cst_40 = arith.constant dense<0.000000e+00> : vector<1xf32>
      %62 = vector.multi_reduction <add>, %61, %cst_40 [0] : vector<8x1xf32> to vector<1xf32>
      %63 = vector.shape_cast %62 : vector<1xf32> to vector<1x1xf32>
      %cst_41 = arith.constant 1.250000e-01 : f32
      %64 = vector.broadcast %cst_41 : f32 to vector<1x1xf32>
      %65 = arith.mulf %63, %64 : vector<1x1xf32>
      %66 = vector.shape_cast %65 : vector<1x1xf32> to vector<1x1xf32>
      %67 = vector.broadcast %66 : vector<1x1xf32> to vector<8x128xf32>
      %c0_42 = arith.constant 0 : index
      %c0_43 = arith.constant 0 : index
      %68 = vector.load %arg4[%c0_42, %c0_43] : memref<8x128xf32, #tpu.memory_space<vmem>>, vector<8x128xf32>
      tpu.vector_store %arg4[%c0_42, %c0_43], %67 {strides = array<i32>} : memref<8x128xf32, #tpu.memory_space<vmem>>, vector<8x128xf32>,
    } else {
    }
    return
  }
  func.func @transform_0(%arg0: i32) -> (i32, i32) {
    %c0_i32 = arith.constant 0 : i32
    %c0_i32_0 = arith.constant 0 : i32
    %c0_i32_1 = arith.constant 0 : i32
    return %c0_i32, %c0_i32_0 : i32, i32
  }
  func.func @transform_1(%arg0: i32) -> (i32, i32) {
    %c0_i32 = arith.constant 0 : i32
    %c0_i32_0 = arith.constant 0 : i32
    return %arg0, %c0_i32 : i32, i32
  }
  func.func @transform_2(%arg0: i32) -> (i32, i32) {
    %c0_i32 = arith.constant 0 : i32
    %c0_i32_0 = arith.constant 0 : i32
    return %c0_i32, %arg0 : i32, i32
  }
  func.func @transform_3(%arg0: i32) -> (i32, i32) {
    %c0_i32 = arith.constant 0 : i32
    %c0_i32_0 = arith.constant 0 : i32
    %c0_i32_1 = arith.constant 0 : i32
    return %c0_i32, %c0_i32_0 : i32, i32
  }
}

</mosaic_0001>

<llo_original>
// kernel: tpu_custom_call.1
$region0: #{tpu_custom_call.1}
  #allocation0 [shape = 'u32[]', space=smem, size = 0x4, offset = 0x4, fixed_abs, tag = 'smem constant byte address 0x4 - core index']
  #allocation1 [shape = 'u32[72,128]{1,0:T(1,128)}', space=vmem, size = 0x9000, scoped, tag = 'internal scratch']
  #allocation2 [shape = 'f32[8,1]{1,0:T(8,128)}', space=vmem, size = 0x1000, scoped, tag = 'scratch operand']
  #allocation3 [shape = 'f32[8,1]{1,0:T(8,128)}', space=vmem, size = 0x1000, scoped, tag = 'scratch operand']
  #allocation4 [shape = 'f32[8,1]{1,0:T(8,128)}', space=vmem, size = 0x1000, scoped, tag = 'scratch operand']
  #allocation5 [shape = 'f32[8,1]{1,0:T(8,128)}', space=vmem, size = 0x1000, scoped, tag = 'scratch operand']
  %s0 = inlined_call_operand.hbm [shape: f32[384,128], index: 0, kind: input, shape index: {}]
  %s1 = inlined_call_operand.hbm [shape: f32[384,128], index: 1, kind: input, shape index: {}]
  %s2 = inlined_call_operand.hbm [shape: f32[8,384], index: 2, kind: input, shape index: {}]
  %s3 = inlined_call_operand.hbm [shape: f32[8,128], index: 3, kind: output, shape index: {}]
  %s4 = sld [smem:[#allocation0]]
  $region65: #{tpu_custom_call.1} parent=0
    _
  %s6 = ssub.s32 1, %s4
  %s7 = scalar_select 0, %s6, %s4
  $region1: #{tpu_custom_call.1} parent=0
    #allocation6 [shape = 'u8[4096]{0}', space=vmem, size = 0x1000, scoped, tag = 'input window, operand 0, single buffered']
    #allocation7 [shape = 's32[2]{0}', space=sflag, size = 0x8, scoped, tag = 'scoped memory for tpu_custom_call.1']
    #allocation8 [shape = 's32[2]{0}', space=sflag, size = 0x8, scoped, tag = 'scoped memory for tpu_custom_call.1']
    #allocation9 [shape = 'u8[131072]{0}', space=vmem, size = 0x20000, scoped, tag = 'input window, operand 1']
    #allocation10 [shape = 's32[2]{0}', space=sflag, size = 0x8, scoped, tag = 'scoped memory for tpu_custom_call.1']
    #allocation11 [shape = 'u8[8192]{0}', space=vmem, size = 0x2000, scoped, tag = 'input window, operand 2']
    #allocation12 [shape = 'u8[4096]{0}', space=vmem, size = 0x1000, scoped, tag = 'output window, operand 0, single buffered']
    %8 = vsyncpa [#allocation7], 0
    %9 = vsyncpa [#allocation10], 0
    %s10 = scalar_lea.sflag [#allocation10], 1
    %11 = vsyncpa %s10, 0
    %12 = vsyncpa [#allocation8], 0
    loop: start=0, step=1, limit=5
    $region2: #{tpu_custom_call.1} parent=1 // loop_pre_header
      _
    $region3: #{tpu_custom_call.1} parent=1 // loop_header
      %s14 = sphi 0, %s18
      %p15 = scmp.ge.s32.totalorder %s14, 5
      %s22 = sphi 0, %s22
      %s24 = sphi 0, %s22
      %s25 = sphi 0, %s24
      %s39 = sphi 0, %s25
      %s45 = sphi 0, %s47
      %s48 = sphi 0, %s45
      %s49 = sphi 0, %s48
      %s65 = sphi 0, %s49
      %s71 = sphi 0, %s73
      %s74 = sphi 0, %s71
      %s75 = sphi 0, %s74
      %s91 = sphi 0, %s75
      %s95 = sphi 0, %s95
      %s97 = sphi 0, %s95
      %s98 = sphi 0, %s97
      %s112 = sphi 0, %s98
    $region4: #{tpu_custom_call.1} parent=1 // loop_header_branch
      %17 = sbr.rel (%p15) target = $region8
    $region5: #{tpu_custom_call.1} parent=1 // loop_body
      %s19 = ssub.s32 %s14, 1
      %s20 = ssub.s32 %s14, 2
      %s21 = sadd.s32 %s14, 1
      %s23 = sadd.s32 %s22, 1
      %p26 = scmp.eq.s32.totalorder %s14, 2
      %p27 = scmp.ne.s32.totalorder %s22, %s24
      %p28 = scmp.eq.s32.totalorder %s14, 0
      %p29 = por %p27, %p28
      %p30 = scmp.ne.s32.totalorder %s22, %s24
      %p31 = scmp.eq.s32.totalorder %s19, 2
      %p32 = por %p30, %p31
      %p33 = scmp.ne.s32.totalorder %s24, %s25
      %p34 = scmp.eq.s32.totalorder %s19, 0
      %p35 = por %p33, %p34
      %p36 = scmp.ne.s32.totalorder %s24, %s25
      %p37 = scmp.eq.s32.totalorder %s20, 2
      %p38 = por %p36, %p37
      %p40 = scmp.ne.s32.totalorder %s25, %s39
      %p41 = scmp.eq.s32.totalorder %s20, 0
      %p42 = por %p40, %p41
      %s43 = ssub.s32 %s14, %s21
      %p44 = scmp.eq.s32.totalorder %s43, 0
      %s46 = sadd.s32 %s45, 1
      %s47 = scalar_select %p44, %s45, %s46
      %p50 = pneg %p44
      %p51 = scmp.eq.s32.totalorder %s14, 2
      %p52 = por %p50, %p51
      %p53 = scmp.ne.s32.totalorder %s45, %s48
      %p54 = scmp.eq.s32.totalorder %s14, 0
      %p55 = por %p53, %p54
      %p56 = scmp.ne.s32.totalorder %s45, %s48
      %p57 = scmp.eq.s32.totalorder %s19, 2
      %p58 = por %p56, %p57
      %p59 = scmp.ne.s32.totalorder %s48, %s49
      %p60 = scmp.eq.s32.totalorder %s19, 0
      %p61 = por %p59, %p60
      %p62 = scmp.ne.s32.totalorder %s48, %s49
      %p63 = scmp.eq.s32.totalorder %s20, 2
      %p64 = por %p62, %p63
      %p66 = scmp.ne.s32.totalorder %s49, %s65
      %p67 = scmp.eq.s32.totalorder %s20, 0
      %p68 = por %p66, %p67
      %s69 = ssub.s32 %s14, %s21
      %p70 = scmp.eq.s32.totalorder %s69, 0
      %s72 = sadd.s32 %s71, 1
      %s73 = scalar_select %p70, %s71, %s72
      %p76 = pneg %p70
      %p77 = scmp.eq.s32.totalorder %s14, 2
      %p78 = por %p76, %p77
      %p79 = scmp.ne.s32.totalorder %s71, %s74
      %p80 = scmp.eq.s32.totalorder %s14, 0
      %p81 = por %p79, %p80
      %p82 = scmp.ne.s32.totalorder %s71, %s74
      %p83 = scmp.eq.s32.totalorder %s19, 2
      %p84 = por %p82, %p83
      %p85 = scmp.ne.s32.totalorder %s74, %s75
      %p86 = scmp.eq.s32.totalorder %s19, 0
      %p87 = por %p85, %p86
      %p88 = scmp.ne.s32.totalorder %s74, %s75
      %p89 = scmp.eq.s32.totalorder %s20, 2
      %p90 = por %p88, %p89
      %p92 = scmp.ne.s32.totalorder %s75, %s91
      %p93 = scmp.eq.s32.totalorder %s20, 0
      %p94 = por %p92, %p93
      %s96 = sadd.s32 %s95, 1
      %p99 = scmp.eq.s32.totalorder %s14, 2
      %p100 = scmp.ne.s32.totalorder %s95, %s97
      %p101 = scmp.eq.s32.totalorder %s14, 0
      %p102 = por %p100, %p101
      %p103 = scmp.ne.s32.totalorder %s95, %s97
      %p104 = scmp.eq.s32.totalorder %s19, 2
      %p105 = por %p103, %p104
      %p106 = scmp.ne.s32.totalorder %s97, %s98
      %p107 = scmp.eq.s32.totalorder %s19, 0
      %p108 = por %p106, %p107
      %p109 = scmp.ne.s32.totalorder %s97, %s98
      %p110 = scmp.eq.s32.totalorder %s20, 2
      %p111 = por %p109, %p110
      %p113 = scmp.ne.s32.totalorder %s98, %s112
      %p114 = scmp.eq.s32.totalorder %s20, 0
      %p115 = por %p113, %p114
      %p116 = scmp.le.s32.totalorder 1, %s14
      %p117 = scmp.lt.s32.totalorder %s14, 4
      %p118 = pnand %p116, %p117
      %p119 = pneg %p118
      // Predicated region
      $region9: #{tpu_custom_call.1} parent=5 // pred_check
        _
      $region10: #{tpu_custom_call.1} parent=5 // pred_check_branch
        %121 = sbr.rel (%p118) target = $region12
      $region11: #{tpu_custom_call.1} parent=5 // pred_region
        %s122 = ssub.s32 %s14, 1
        // Predicated region
        $region13: #{tpu_custom_call.1} parent=11 // pred_check
          %p123 = pneg %p35
        $region14: #{tpu_custom_call.1} parent=11 // pred_check_branch
          %125 = sbr.rel (%p123) target = $region16
        $region15: #{tpu_custom_call.1} parent=11 // pred_region
          %127 = vsyncadd [#allocation7], 0
          %s129 = sshll.u32 %s0, 4
          %s130 = int_to_ptr.hbm [resolvable:$true] %s129
          %s131 = sshll.u32 [#allocation6], 4
          %s132 = int_to_ptr.vmem [resolvable:$true] %s131
          %134 = dma.hbm_to_vmem [thread:$0]  %s130, 128, %s132, [#allocation7]
        $region16: #{tpu_custom_call.1} parent=11 // pred_fallthru
          _
      $region12: #{tpu_custom_call.1} parent=5 // pred_fallthru
        _
      %p135 = scmp.lt.s32.totalorder %s14, 3
      // Predicated region
      $region17: #{tpu_custom_call.1} parent=5 // pred_check
        %p136 = pneg %p135
      $region18: #{tpu_custom_call.1} parent=5 // pred_check_branch
        %138 = sbr.rel (%p136) target = $region20
      $region19: #{tpu_custom_call.1} parent=5 // pred_region
        // Predicated region
        $region21: #{tpu_custom_call.1} parent=19 // pred_check
          %p139 = pneg %p55
        $region22: #{tpu_custom_call.1} parent=19 // pred_check_branch
          %141 = sbr.rel (%p139) target = $region24
        $region23: #{tpu_custom_call.1} parent=19 // pred_region
          %s142 = sand.u32 %s14, 1
          %s143 = scalar_lea.sflag [#allocation10], %s142
          %s144 = sand.u32 %s45, 1
          %s145 = smul.addr %s144, 128
          %s146 = scalar_lea.vmem [#allocation9], %s145
          %s147 = smul.u32 16, %s14
          %149 = vsyncadd %s143, 0
          %s150 = smul.addr %s147, 8
          %s151 = scalar_lea.hbm %s1, %s150
          %s152 = sshll.u32 %s151, 4
          %s153 = int_to_ptr.hbm [resolvable:$true] %s152
          %s154 = sshll.u32 %s146, 4
          %s155 = int_to_ptr.vmem [resolvable:$true] %s154
          %160 = dma.hbm_to_vmem [thread:$0]  %s153, 2048, %s155, %s143, 128, 128, 8
        $region24: #{tpu_custom_call.1} parent=19 // pred_fallthru
          _
        // Predicated region
        $region25: #{tpu_custom_call.1} parent=19 // pred_check
          %p161 = pneg %p81
        $region26: #{tpu_custom_call.1} parent=19 // pred_check_branch
          %163 = sbr.rel (%p161) target = $region28
        $region27: #{tpu_custom_call.1} parent=19 // pred_region
          %s164 = sand.u32 %s14, 1
          %s165 = scalar_lea.sflag [#allocation10], %s164
          %s166 = sand.u32 %s71, 1
          %s167 = smul.addr %s166, 8
          %s168 = scalar_lea.vmem [#allocation11], %s167
          %170 = vsyncadd %s165, 0
          %s171 = smul.addr %s14, 8
          %s172 = scalar_lea.hbm %s2, %s171
          %s174 = sshll.u32 %s172, 4
          %s175 = int_to_ptr.hbm [resolvable:$true] %s174
          %s176 = sshll.u32 %s168, 4
          %s177 = int_to_ptr.vmem [resolvable:$true] %s176
          %179 = dma.hbm_to_vmem [thread:$0]  %s175, 128, %s177, %s165
        $region28: #{tpu_custom_call.1} parent=19 // pred_fallthru
          _
      $region20: #{tpu_custom_call.1} parent=5 // pred_fallthru
        _
      %p180 = scmp.le.s32.totalorder 1, %s14
      %p181 = scmp.lt.s32.totalorder %s14, 4
      %p182 = pnand %p180, %p181
      %p183 = pneg %p182
      // Predicated region
      $region29: #{tpu_custom_call.1} parent=5 // pred_check
        _
      $region30: #{tpu_custom_call.1} parent=5 // pred_check_branch
        %185 = sbr.rel (%p182) target = $region32
      $region31: #{tpu_custom_call.1} parent=5 // pred_region
        %s186 = ssub.s32 %s14, 1
        // Predicated region
        $region33: #{tpu_custom_call.1} parent=31 // pred_check
          %p187 = pneg %p35
        $region34: #{tpu_custom_call.1} parent=31 // pred_check_branch
          %189 = sbr.rel (%p187) target = $region36
        $region35: #{tpu_custom_call.1} parent=31 // pred_region
          %191 = dma.done [#allocation7], 128
        $region36: #{tpu_custom_call.1} parent=31 // pred_fallthru
          _
        %s192 = sand.u32 %s19, 1
        %s193 = scalar_lea.sflag [#allocation10], %s192
        %s194 = sand.u32 %s48, 1
        %s195 = smul.addr %s194, 128
        %s196 = scalar_lea.vmem [#allocation9], %s195
        // Predicated region
        $region37: #{tpu_custom_call.1} parent=31 // pred_check
          %p197 = pneg %p61
        $region38: #{tpu_custom_call.1} parent=31 // pred_check_branch
          %199 = sbr.rel (%p197) target = $region40
        $region39: #{tpu_custom_call.1} parent=31 // pred_region
          %201 = dma.done %s193, 2048
        $region40: #{tpu_custom_call.1} parent=31 // pred_fallthru
          _
        %s202 = sand.u32 %s19, 1
        %s203 = scalar_lea.sflag [#allocation10], %s202
        %s204 = sand.u32 %s74, 1
        %s205 = smul.addr %s204, 8
        %s206 = scalar_lea.vmem [#allocation11], %s205
        // Predicated region
        $region41: #{tpu_custom_call.1} parent=31 // pred_check
          %p207 = pneg %p87
        $region42: #{tpu_custom_call.1} parent=31 // pred_check_branch
          %209 = sbr.rel (%p207) target = $region44
        $region43: #{tpu_custom_call.1} parent=31 // pred_region
          %211 = dma.done %s203, 128
        $region44: #{tpu_custom_call.1} parent=31 // pred_fallthru
          _
        %p212 = pneg %p35
        %p213 = pneg %p32
        %s214 = sand.u32 %s19, 1
        %s215 = scalar_lea.sflag [#allocation10], %s214
        %s216 = sand.u32 %s48, 1
        %s217 = smul.addr %s216, 128
        %s218 = scalar_lea.vmem [#allocation9], %s217
        %p219 = pneg %p61
        %p220 = pneg %p58
        %s221 = sand.u32 %s19, 1
        %s222 = scalar_lea.sflag [#allocation10], %s221
        %s223 = sand.u32 %s74, 1
        %s224 = smul.addr %s223, 8
        %s225 = scalar_lea.vmem [#allocation11], %s224
        %p226 = pneg %p87
        %p227 = pneg %p84
        %p228 = pneg %p108
        %p229 = pneg %p105
        %s230 = smul.u32 16, %s19
        %p231 = scmp.eq.s32.totalorder %s19, 0
        // Predicated region
        $region45: #{tpu_custom_call.1} parent=31 // pred_check
          %p232 = pneg %p231
        $region46: #{tpu_custom_call.1} parent=31 // pred_check_branch
          %234 = sbr.rel (%p232) target = $region48
        $region47: #{tpu_custom_call.1} parent=31 // pred_region
          %vm235 = vcmask 7168
          %236 = vst.msk [vmem:[#allocation2] sm:$0xff] %vm235, -1e+30
          %237 = vst.msk [vmem:[#allocation3] sm:$0xff] %vm235, 0.0
          %238 = vst.msk [vmem:[#allocation4] sm:$0xff] %vm235, 0.0
          %239 = vst.msk [vmem:[#allocation5] sm:$0xff] %vm235, 0.0
        $region48: #{tpu_custom_call.1} parent=31 // pred_fallthru
          _
        %v240 = vld [vmem:[#allocation6] sm:$0xff]
        %v241 = vmul.f32 %v240, 14.285714
        %v242 = vld [vmem:[%s196] sm:$0xff]
        %v243 = vld [vmem:[%s196 + $0x8] sm:$0xff]
        %v244 = vld [vmem:[%s196 + $0x10] sm:$0xff]
        %v245 = vld [vmem:[%s196 + $0x18] sm:$0xff]
        %v246 = vld [vmem:[%s196 + $0x20] sm:$0xff]
        %v247 = vld [vmem:[%s196 + $0x28] sm:$0xff]
        %v248 = vld [vmem:[%s196 + $0x30] sm:$0xff]
        %v249 = vld [vmem:[%s196 + $0x38] sm:$0xff]
        %v250 = vld [vmem:[%s196 + $0x40] sm:$0xff]
        %v251 = vld [vmem:[%s196 + $0x48] sm:$0xff]
        %v252 = vld [vmem:[%s196 + $0x50] sm:$0xff]
        %v253 = vld [vmem:[%s196 + $0x58] sm:$0xff]
        %v254 = vld [vmem:[%s196 + $0x60] sm:$0xff]
        %v255 = vld [vmem:[%s196 + $0x68] sm:$0xff]
        %v256 = vld [vmem:[%s196 + $0x70] sm:$0xff]
        %v257 = vld [vmem:[%s196 + $0x78] sm:$0xff]
        %258 = vmatpush.xpose.msra.mxu0 %v257
        %259 = vmatpush.xpose.msra.mxu0 %v256
        %260 = vmatpush.xpose.msra.mxu0 %v255
        %261 = vmatpush.xpose.msra.mxu0 %v254
        %262 = vmatpush.xpose.msra.mxu0 %v253
        %263 = vmatpush.xpose.msra.mxu0 %v252
        %264 = vmatpush.xpose.msra.mxu0 %v251
        %265 = vmatpush.xpose.msra.mxu0 %v250
        %266 = vmatpush.xpose.msra.mxu0 %v249
        %267 = vmatpush.xpose.msra.mxu0 %v248
        %268 = vmatpush.xpose.msra.mxu0 %v247
        %269 = vmatpush.xpose.msra.mxu0 %v246
        %270 = vmatpush.xpose.msra.mxu0 %v245
        %271 = vmatpush.xpose.msra.mxu0 %v244
        %272 = vmatpush.xpose.msra.mxu0 %v243
        %273 = vmatpush.xpose.msra.mxu0 %v242
        %274 = vmatmul.f32.gmra.mxu0 %v241
        %v275 = vpop.f32.mrf.mxu0
        %v276 = vadd.f32 0.0, %v275
        %277 = vdwg.mxu0
        %v278 = vlaneseq
        %v279 = vand.u32 %v278, 127
        %s280 = smul.u32 %s19, 128
        %v281 = vstv %s280
        %v282 = vadd.s32 %v279, %v281
        %v283 = vlaneseq
        %v284 = vshrl.u32 %v283, 7
        %vm285 = vcmp.eq.s32.totalorder %v282, %v284
        %v286 = vld [vmem:[%s206] sm:$0xff]
        %v287 = vsel %vm285, 0.0, %v286
        %v288 = vld [vmem:[#allocation2] sm:$0xff]
        %289 = vmax.xlane.f32.xlu0 %v276
        %v290 = vpop.xlane.xlu0 %289
        %v291 = vmax.f32 %v288, %v290
        %v292 = vsub.f32 %v288, %v291
        %v293 = vmul.f32 %v292, 1.442695
        %v294 = vpow.pop %v293
        %v295 = vsel %vm285, -1e+30, %v276
        %v296 = vld [vmem:[#allocation3] sm:$0xff]
        %v297 = vmul.f32 %v294, %v296
        %299 = vset.pattern.permute.xlu0 0
        %300 = vperm.xlu0 %299, %v291
        %v301 = vpop.permute.xlu0 %300
        %v303 = vsub.f32 %v295, %v301
        %v304 = vmul.f32 %v303, 1.442695
        %v305 = vpow.pop %v304
        %306 = vadd.xlane.f32.xlu0 %v305
        %v307 = vpop.xlane.xlu0 %306
        %v308 = vadd.f32 %v297, %v307
        %vm309 = vcmask 7168
        %310 = vst.msk [vmem:[#allocation3] sm:$0xff] %vm309, %v308
        %v311 = vld [vmem:[#allocation4] sm:$0xff]
        %v312 = vmul.f32 %v287, %v276
        %313 = vadd.xlane.f32.xlu0 %v312
        %v314 = vpop.xlane.xlu0 %313
        %v315 = vadd.f32 %v311, %v314
        %316 = vst.msk [vmem:[#allocation4] sm:$0xff] %vm309, %v315
        %v317 = vld [vmem:[#allocation5] sm:$0xff]
        %318 = vadd.xlane.f32.xlu0 %v287
        %v319 = vpop.xlane.xlu0 %318
        %v320 = vadd.f32 %v317, %v319
        %321 = vst.msk [vmem:[#allocation5] sm:$0xff] %vm309, %v320
        %322 = vst.msk [vmem:[#allocation2] sm:$0xff] %vm309, %v291
        %p323 = scmp.eq.s32.totalorder %s19, 2
        // Predicated region
        $region49: #{tpu_custom_call.1} parent=31 // pred_check
          %p324 = pneg %p323
        $region50: #{tpu_custom_call.1} parent=31 // pred_check_branch
          %326 = sbr.rel (%p324) target = $region52
        $region51: #{tpu_custom_call.1} parent=31 // pred_region
          %v327 = vld [vmem:[#allocation2] sm:$0xff]
          %v328 = vld [vmem:[#allocation3] sm:$0xff]
          %v329 = vld [vmem:[#allocation4] sm:$0xff]
          %v330 = vld [vmem:[#allocation5] sm:$0xff]
          %v331 = vadd.f32 %v328, 1e-12
          %v332 = vlog2.pop %v331
          %v333 = vmul.f32 %v332, 0.6931472
          %v334 = vadd.f32 %v327, %v333
          %v335 = vmul.f32 %v330, %v334
          %v336 = vsub.f32 %v329, %v335
          %v337 = vrcp.pop %v330
          %v338 = vmul.f32 %v330, %v337
          %v339 = vsub.f32 1.0, %v338
          %v340 = vmul.f32 %v337, %v339
          %v341 = vadd.f32 %v337, %v340
          %vm342 = vweird.f32 %v330
          %vm343 = vweird.f32 %v337
          %vm344 = vmor %vm342, %vm343
          %v345 = vsel %vm344, %v337, %v341
          %v346 = vand.u32 2147483647, %v330
          %vm347 = vcmp.eq.f32.partialorder %v346, 8.507059e+37
          %v348 = vand.u32 %v330, 2147483648
          %v349 = vor.u32 1.1754944e-38, %v348
          %v350 = vsel %vm347, %v349, %v345
          %v351 = vmul.f32 %v336, %v350
          %v352 = vmul.f32 %v351, -1.0
          %v353 = vsel %vm309, %v352, 0.0
          %v354 = vrot.slane %v353, 4
          %v355 = vadd.f32 %v353, %v354
          %v356 = vrot.slane %v355, 2
          %v357 = vadd.f32 %v355, %v356
          %v358 = vrot.slane %v357, 1
          %v359 = vadd.f32 %v357, %v358
          %v360 = vmul.f32 %v359, 0.125
          %362 = vset.pattern.permute.xlu0 0
          %363 = vperm.xlu0 %362, %v360
          %v364 = vpop.permute.xlu0 %363
          %366 = vst [vmem:[#allocation12] sm:$0xff] %v364
        $region52: #{tpu_custom_call.1} parent=31 // pred_fallthru
          _
        // Predicated region
        $region53: #{tpu_custom_call.1} parent=31 // pred_check
          %p367 = pneg %p105
        $region54: #{tpu_custom_call.1} parent=31 // pred_check_branch
          %369 = sbr.rel (%p367) target = $region56
        $region55: #{tpu_custom_call.1} parent=31 // pred_region
          %371 = vsyncadd [#allocation8], 0
          %s373 = sshll.u32 [#allocation12], 4
          %s374 = int_to_ptr.vmem [resolvable:$true] %s373
          %s375 = sshll.u32 %s3, 4
          %s376 = int_to_ptr.hbm [resolvable:$true] %s375
          %378 = dma.vmem_to_hbm [thread:$0]  %s374, 128, %s376, [#allocation8]
        $region56: #{tpu_custom_call.1} parent=31 // pred_fallthru
          _
        // Predicated region
        $region57: #{tpu_custom_call.1} parent=31 // pred_check
          %p379 = pneg %p105
        $region58: #{tpu_custom_call.1} parent=31 // pred_check_branch
          %381 = sbr.rel (%p379) target = $region60
        $region59: #{tpu_custom_call.1} parent=31 // pred_region
          %383 = dma.done [#allocation8], 128
        $region60: #{tpu_custom_call.1} parent=31 // pred_fallthru
          _
      $region32: #{tpu_custom_call.1} parent=5 // pred_fallthru
        _
      %p384 = scmp.le.s32.totalorder 2, %s14
      // Predicated region
      $region61: #{tpu_custom_call.1} parent=5 // pred_check
        %p385 = pneg %p384
      $region62: #{tpu_custom_call.1} parent=5 // pred_check_branch
        %387 = sbr.rel (%p385) target = $region64
      $region63: #{tpu_custom_call.1} parent=5 // pred_region
        %s388 = ssub.s32 %s14, 2
      $region64: #{tpu_custom_call.1} parent=5 // pred_fallthru
        _
    $region6: #{tpu_custom_call.1} parent=1 // loop_footer
      %s18 = sadd.s32 1, %s14
    $region7: #{tpu_custom_call.1} parent=1 // loop_footer_branch
      %13 = sbr.rel target = $region3
    $region8: #{tpu_custom_call.1} parent=1 // loop_exit
      _
    %389 = vsyncpa [#allocation7], 1
    %s390 = scalar_lea.sflag [#allocation7], 1
    %391 = vsyncpa %s390, 1
    %392 = vsyncpa [#allocation10], 1
    %s393 = scalar_lea.sflag [#allocation10], 1
    %394 = vsyncpa %s393, 1
    %395 = vsyncpa [#allocation8], 1
    %s396 = scalar_lea.sflag [#allocation8], 1
    %397 = vsyncpa %s396, 1

</llo_original>
